<compile_context>
chip_gen: v7x
topology: tpu7x:2x2x1
jax: 0.10.0
libtpu: 0.0.40
codegen_flags: <defaults>
</compile_context>

<pallas_src>
import jax
import jax.numpy as jnp
from jax.experimental import pallas as pl
from jax.experimental.pallas import tpu as pltpu

NUM_NETS = 3      # number of branches being concatenated
C_IN = 4          # input channels
C_OUT = 8         # output channels per branch (concat total = NUM_NETS * C_OUT)


def _concat_branches_kernel(x_ref, w_ref, b_ref, o_ref):
    """x_ref: (C_IN, row_tile)        w_ref: (total_c, C_IN)
    b_ref: (total_c, 1)               o_ref: (total_c, row_tile)

    One fused MXU matmul over all branches; the concat along the output
    channel axis is simply the row layout of w_ref / o_ref.
    """
    y = jnp.dot(w_ref[...], x_ref[...], preferred_element_type=jnp.float32)
    y = y + b_ref[...]                       # lane-broadcast bias
    o_ref[...] = jnp.maximum(y, 0.0).astype(o_ref.dtype)


def _choose_row_tile(hw_padded, n_batch, max_tile=32768, min_total_steps=4):
    """Largest 128-multiple tile dividing hw_padded, capped by a VMEM budget
    (max_tile=32768 -> ~8 MiB double-buffered x+out, fits default scoped VMEM
    on v5e/v6e/v7x).  Prefer tiles that still leave >= min_total_steps grid
    steps so both v7x TensorCores get >= 2 pipelined steps each."""
    assert hw_padded % 128 == 0
    cap = min(max_tile, hw_padded)
    candidates = [t for t in range(128, cap + 1, 128) if hw_padded % t == 0]
    ok = [t for t in candidates if n_batch * (hw_padded // t) >= min_total_steps]
    return max(ok) if ok else max(candidates)


def concat_forward(x_nchw, weights, biases):
    """x_nchw: (N, C_IN, H, W) float32
    weights: (NUM_NETS, C_IN, C_OUT), biases: (NUM_NETS, C_OUT)
    returns: (N, NUM_NETS * C_OUT, H, W) — concat over channel dim (dim=1)."""
    n, c, h, w = x_nchw.shape
    assert c == C_IN
    total_c = NUM_NETS * C_OUT

    hw = h * w
    hw_padded = ((hw + 127) // 128) * 128

    # Free (row-major) reshape — no transpose, no extra HBM traffic.
    x_flat = x_nchw.reshape(n, c, hw)
    if hw_padded != hw:
        x_flat = jnp.pad(x_flat, ((0, 0), (0, 0), (0, hw_padded - hw)))

    row_tile = _choose_row_tile(hw_padded, n)

    # Fuse all branch weights into one matrix whose row order *is* the concat:
    # w_t[i*C_OUT + d, cin] = weights[i, cin, d]
    w_t = jnp.transpose(weights, (0, 2, 1)).reshape(total_c, c)
    b_col = biases.reshape(total_c, 1)

    bytes_accessed = 4 * (n * c * hw_padded        # x
                          + total_c * c            # weights
                          + total_c                # bias
                          + n * total_c * hw_padded)  # output

    out_flat = pl.pallas_call(
        _concat_branches_kernel,
        out_shape=jax.ShapeDtypeStruct((n, total_c, hw_padded), x_nchw.dtype),
        grid_spec=pltpu.PrefetchScalarGridSpec(
            num_scalar_prefetch=0,
            grid=(n, hw_padded // row_tile),
            in_specs=[
                # activations: squeezed batch dim, full (tiny) channel dim,
                # tiled over the lane/pixel axis
                pl.BlockSpec((pl.Squeezed(), c, row_tile),
                             lambda b, r: (b, 0, r)),
                # fused branch weights: whole (total_c, C_IN) resident in VMEM
                pl.BlockSpec((total_c, c), lambda b, r: (0, 0)),
                # fused biases as a column vector
                pl.BlockSpec((total_c, 1), lambda b, r: (0, 0)),
            ],
            out_specs=pl.BlockSpec((pl.Squeezed(), total_c, row_tile),
                                   lambda b, r: (b, 0, r)),
        ),
        compiler_params=pltpu.CompilerParams(
            dimension_semantics=("parallel", "parallel")),
        cost_estimate=pl.CostEstimate(
            flops=2 * total_c * c * n * hw_padded,
            transcendentals=0,
            bytes_accessed=bytes_accessed),
    )(x_flat, w_t, b_col)

    if hw_padded != hw:
        out_flat = out_flat[:, :, :hw]
    return out_flat.reshape(n, total_c, h, w)


def _reference(x_nchw, weights, biases):
    """Plain-JAX reference: per-branch 1x1 conv + ReLU, concat on dim=1."""
    outs = []
    for i in range(NUM_NETS):
        y = jnp.einsum("nchw,cd->ndhw", x_nchw, weights[i])
        y = y + biases[i][None, :, None, None]
        outs.append(jnp.maximum(y, 0.0))
    return jnp.concatenate(outs, axis=1)


if __name__ == "__main__":
    key = jax.random.PRNGKey(0)
    kx, kw, kb = jax.random.split(key, 3)

    N, H, W = 2, 16, 16
    x = jax.random.normal(kx, (N, C_IN, H, W), dtype=jnp.float32)

    # deterministic synthetic parameters for the branch nets
    weights = 0.1 * jax.random.normal(kw, (NUM_NETS, C_IN, C_OUT), jnp.float32)
    biases = 0.05 * jax.random.normal(kb, (NUM_NETS, C_OUT), jnp.float32)

    out = concat_forward(x, weights, biases)
    out = jax.block_until_ready(out)

    ref = _reference(x, weights, biases)
    assert out.shape == (N, NUM_NETS * C_OUT, H, W)
    assert jnp.allclose(out, ref, atol=1e-5, rtol=1e-5)

    print("KERNEL_OK")
</pallas_src>

<mosaic_0001>
module attributes {stable_mosaic.version = 11 : i64} {
  func.func @_concat_branches_kernel(%arg0: i32, %arg1: i32, %arg2: memref<1x4x128xf32, #tpu.memory_space<vmem>>, %arg3: memref<24x4xf32, #tpu.memory_space<vmem>>, %arg4: memref<24x1xf32, #tpu.memory_space<vmem>>, %arg5: memref<1x24x128xf32, #tpu.memory_space<vmem>>) attributes {dimension_semantics = [#tpu.dimension_semantics<parallel>, #tpu.dimension_semantics<parallel>], iteration_bounds = array<i64: 2, 2>, scalar_prefetch = 0 : i64, scratch_operands = 0 : i64, tpu.core_type = #tpu.core_type<tc>, window_params = [{transform_indices = @transform_0, window_bounds = array<i64: 1, 4, 128>}, {pipeline_mode = #tpu.pipeline_mode<synchronous>, transform_indices = @transform_1, window_bounds = array<i64: 24, 4>}, {pipeline_mode = #tpu.pipeline_mode<synchronous>, transform_indices = @transform_2, window_bounds = array<i64: 24, 1>}, {transform_indices = @transform_3, window_bounds = array<i64: 1, 24, 128>}]} {
    %c0 = arith.constant 0 : index
    %c0_0 = arith.constant 0 : index
    %0 = vector.load %arg3[%c0, %c0_0] : memref<24x4xf32, #tpu.memory_space<vmem>>, vector<24x4xf32>
    %c0_1 = arith.constant 0 : index
    %c0_2 = arith.constant 0 : index
    %c0_3 = arith.constant 0 : index
    %1 = vector.load %arg2[%c0_1, %c0_2, %c0_3] : memref<1x4x128xf32, #tpu.memory_space<vmem>>, vector<1x4x128xf32>
    %2 = vector.shape_cast %1 : vector<1x4x128xf32> to vector<4x128xf32>
    %cst = arith.constant dense<0.000000e+00> : vector<24x128xf32>
    %3 = tpu.matmul %0, %2, %cst {dimension_numbers = #tpu.dot_dimension_numbers<[1], [0], [0], [1], [0, 0, 1, 1], [], []>} : vector<24x4xf32>, vector<4x128xf32>, vector<24x128xf32> -> vector<24x128xf32>
    %c0_4 = arith.constant 0 : index
    %c0_5 = arith.constant 0 : index
    %4 = vector.load %arg4[%c0_4, %c0_5] : memref<24x1xf32, #tpu.memory_space<vmem>>, vector<24x1xf32>
    %5 = vector.broadcast %4 : vector<24x1xf32> to vector<24x128xf32>
    %6 = arith.addf %3, %5 : vector<24x128xf32>
    %cst_6 = arith.constant 0.000000e+00 : f32
    %7 = vector.broadcast %cst_6 : f32 to vector<24x128xf32>
    %8 = arith.maximumf %6, %7 : vector<24x128xf32>
    %c0_7 = arith.constant 0 : index
    %c0_8 = arith.constant 0 : index
    %c0_9 = arith.constant 0 : index
    %9 = vector.load %arg5[%c0_7, %c0_8, %c0_9] : memref<1x24x128xf32, #tpu.memory_space<vmem>>, vector<1x24x128xf32>
    %10 = vector.shape_cast %9 : vector<1x24x128xf32> to vector<24x128xf32>
    %11 = vector.shape_cast %8 : vector<24x128xf32> to vector<1x24x128xf32>
    tpu.vector_store %arg5[%c0_7, %c0_8, %c0_9], %11 {strides = array<i32>} : memref<1x24x128xf32, #tpu.memory_space<vmem>>, vector<1x24x128xf32>,
    return
  }
  func.func @transform_0(%arg0: i32, %arg1: i32) -> (i32, i32, i32) {
    %c0_i32 = arith.constant 0 : i32
    %c0_i32_0 = arith.constant 0 : i32
    return %arg0, %c0_i32, %arg1 : i32, i32, i32
  }
  func.func @transform_1(%arg0: i32, %arg1: i32) -> (i32, i32) {
    %c0_i32 = arith.constant 0 : i32
    %c0_i32_0 = arith.constant 0 : i32
    %c0_i32_1 = arith.constant 0 : i32
    return %c0_i32, %c0_i32_0 : i32, i32
  }
  func.func @transform_2(%arg0: i32, %arg1: i32) -> (i32, i32) {
    %c0_i32 = arith.constant 0 : i32
    %c0_i32_0 = arith.constant 0 : i32
    %c0_i32_1 = arith.constant 0 : i32
    return %c0_i32, %c0_i32_0 : i32, i32
  }
  func.func @transform_3(%arg0: i32, %arg1: i32) -> (i32, i32, i32) {
    %c0_i32 = arith.constant 0 : i32
    %c0_i32_0 = arith.constant 0 : i32
    return %arg0, %c0_i32, %arg1 : i32, i32, i32
  }
}

</mosaic_0001>

<llo_original>
// kernel: tpu_custom_call.1
$region0: #{tpu_custom_call.1}
  #allocation0 [shape = 'u32[]', space=smem, size = 0x4, offset = 0x4, fixed_abs, tag = 'smem constant byte address 0x4 - core index']
  #allocation1 [shape = 'u32[144,128]{1,0:T(1,128)}', space=vmem, size = 0x12000, scoped, tag = 'internal scratch']
  %s0 = inlined_call_operand.vmem [shape: f32[2,4,256], index: 0, kind: input, shape index: {}]
  %s1 = inlined_call_operand.vmem [shape: f32[24,4], index: 1, kind: input, shape index: {}]
  %s2 = inlined_call_operand.vmem [shape: f32[24,1], index: 2, kind: input, shape index: {}]
  %s3 = inlined_call_operand.hbm [shape: f32[2,24,256], index: 3, kind: output, shape index: {}]
  %s4 = sld [smem:[#allocation0]]
  $region45: #{tpu_custom_call.1} parent=0
    _
  %s6 = ssub.s32 1, %s4
  %s7 = scalar_select 0, %s6, %s4
  $region1: #{tpu_custom_call.1} parent=0
    #allocation2 [shape = 'u8[24576]{0}', space=vmem, size = 0x6000, scoped, tag = 'output window, operand 0']
    #allocation3 [shape = 's32[2]{0}', space=sflag, size = 0x8, scoped, tag = 'scoped memory for tpu_custom_call.1']
    %8 = vsyncpa [#allocation3], 0
    %s9 = scalar_lea.sflag [#allocation3], 1
    %10 = vsyncpa %s9, 0
    loop: start=0, step=1, limit=6
    $region2: #{tpu_custom_call.1} parent=1 // loop_pre_header
      _
    $region3: #{tpu_custom_call.1} parent=1 // loop_header
      %s12 = sphi 0, %s16
      %p13 = scmp.ge.s32.totalorder %s12, 6
      %s19 = sphi 0, %s31
      %s20 = sphi 0, %s27
      %s21 = sphi 0, %s19
      %s22 = sphi 0, %s20
      %s23 = sphi 0, %s21
      %s24 = sphi 0, %s22
      %s36 = sphi 0, %s38
      %s39 = sphi 0, %s36
      %s40 = sphi 0, %s39
      %s56 = sphi 0, %s40
      %s60 = sphi 0, %s60
      %s62 = sphi 0, %s60
      %s63 = sphi 0, %s62
      %s77 = sphi 0, %s63
      %s81 = sphi 0, %s81
      %s83 = sphi 0, %s81
      %s84 = sphi 0, %s83
      %s98 = sphi 0, %s84
      %s106 = sphi 0, %s108
      %s109 = sphi 0, %s106
      %s110 = sphi 0, %s109
      %s126 = sphi 0, %s110
    $region4: #{tpu_custom_call.1} parent=1 // loop_header_branch
      %15 = sbr.rel (%p13) target = $region8
    $region5: #{tpu_custom_call.1} parent=1 // loop_body
      %s17 = ssub.s32 %s12, 1
      %s18 = ssub.s32 %s12, 2
      %s25 = sadd.s32 1, %s20
      %p26 = scmp.ge.s32.totalorder %s25, 2
      %s27 = scalar_select %p26, 0, %s25
      %s28 = sadd.s32 1, %s19
      %s29 = scalar_select %p26, %s28, %s19
      %p30 = scmp.ge.s32.totalorder %s29, 2
      %s31 = scalar_select %p30, 0, %s29
      %s32 = ssub.s32 %s19, %s31
      %s33 = ssub.s32 %s20, %s27
      %s34 = sor.u32 %s32, %s33
      %p35 = scmp.eq.s32.totalorder %s34, 0
      %s37 = sadd.s32 %s36, 1
      %s38 = scalar_select %p35, %s36, %s37
      %p41 = pneg %p35
      %p42 = scmp.eq.s32.totalorder %s12, 3
      %p43 = por %p41, %p42
      %p44 = scmp.ne.s32.totalorder %s36, %s39
      %p45 = scmp.eq.s32.totalorder %s12, 0
      %p46 = por %p44, %p45
      %p47 = scmp.ne.s32.totalorder %s36, %s39
      %p48 = scmp.eq.s32.totalorder %s17, 3
      %p49 = por %p47, %p48
      %p50 = scmp.ne.s32.totalorder %s39, %s40
      %p51 = scmp.eq.s32.totalorder %s17, 0
      %p52 = por %p50, %p51
      %p53 = scmp.ne.s32.totalorder %s39, %s40
      %p54 = scmp.eq.s32.totalorder %s18, 3
      %p55 = por %p53, %p54
      %p57 = scmp.ne.s32.totalorder %s40, %s56
      %p58 = scmp.eq.s32.totalorder %s18, 0
      %p59 = por %p57, %p58
      %s61 = sadd.s32 %s60, 1
      %p64 = scmp.eq.s32.totalorder %s12, 3
      %p65 = scmp.ne.s32.totalorder %s60, %s62
      %p66 = scmp.eq.s32.totalorder %s12, 0
      %p67 = por %p65, %p66
      %p68 = scmp.ne.s32.totalorder %s60, %s62
      %p69 = scmp.eq.s32.totalorder %s17, 3
      %p70 = por %p68, %p69
      %p71 = scmp.ne.s32.totalorder %s62, %s63
      %p72 = scmp.eq.s32.totalorder %s17, 0
      %p73 = por %p71, %p72
      %p74 = scmp.ne.s32.totalorder %s62, %s63
      %p75 = scmp.eq.s32.totalorder %s18, 3
      %p76 = por %p74, %p75
      %p78 = scmp.ne.s32.totalorder %s63, %s77
      %p79 = scmp.eq.s32.totalorder %s18, 0
      %p80 = por %p78, %p79
      %s82 = sadd.s32 %s81, 1
      %p85 = scmp.eq.s32.totalorder %s12, 3
      %p86 = scmp.ne.s32.totalorder %s81, %s83
      %p87 = scmp.eq.s32.totalorder %s12, 0
      %p88 = por %p86, %p87
      %p89 = scmp.ne.s32.totalorder %s81, %s83
      %p90 = scmp.eq.s32.totalorder %s17, 3
      %p91 = por %p89, %p90
      %p92 = scmp.ne.s32.totalorder %s83, %s84
      %p93 = scmp.eq.s32.totalorder %s17, 0
      %p94 = por %p92, %p93
      %p95 = scmp.ne.s32.totalorder %s83, %s84
      %p96 = scmp.eq.s32.totalorder %s18, 3
      %p97 = por %p95, %p96
      %p99 = scmp.ne.s32.totalorder %s84, %s98
      %p100 = scmp.eq.s32.totalorder %s18, 0
      %p101 = por %p99, %p100
      %s102 = ssub.s32 %s19, %s31
      %s103 = ssub.s32 %s20, %s27
      %s104 = sor.u32 %s102, %s103
      %p105 = scmp.eq.s32.totalorder %s104, 0
      %s107 = sadd.s32 %s106, 1
      %s108 = scalar_select %p105, %s106, %s107
      %p111 = pneg %p105
      %p112 = scmp.eq.s32.totalorder %s12, 3
      %p113 = por %p111, %p112
      %p114 = scmp.ne.s32.totalorder %s106, %s109
      %p115 = scmp.eq.s32.totalorder %s12, 0
      %p116 = por %p114, %p115
      %p117 = scmp.ne.s32.totalorder %s106, %s109
      %p118 = scmp.eq.s32.totalorder %s17, 3
      %p119 = por %p117, %p118
      %p120 = scmp.ne.s32.totalorder %s109, %s110
      %p121 = scmp.eq.s32.totalorder %s17, 0
      %p122 = por %p120, %p121
      %p123 = scmp.ne.s32.totalorder %s109, %s110
      %p124 = scmp.eq.s32.totalorder %s18, 3
      %p125 = por %p123, %p124
      %p127 = scmp.ne.s32.totalorder %s110, %s126
      %p128 = scmp.eq.s32.totalorder %s18, 0
      %p129 = por %p127, %p128
      %p130 = scmp.le.s32.totalorder 1, %s12
      %p131 = scmp.lt.s32.totalorder %s12, 5
      %p132 = pnand %p130, %p131
      %p133 = pneg %p132
      // Predicated region
      $region9: #{tpu_custom_call.1} parent=5 // pred_check
        _
      $region10: #{tpu_custom_call.1} parent=5 // pred_check_branch
        %135 = sbr.rel (%p132) target = $region12
      $region11: #{tpu_custom_call.1} parent=5 // pred_region
        %s136 = ssub.s32 %s12, 1
        // Predicated region
        $region13: #{tpu_custom_call.1} parent=11 // pred_check
          %p137 = pneg %p73
        $region14: #{tpu_custom_call.1} parent=11 // pred_check_branch
          %139 = sbr.rel (%p137) target = $region16
        $region15: #{tpu_custom_call.1} parent=11 // pred_region
          _
        $region16: #{tpu_custom_call.1} parent=11 // pred_fallthru
          _
        // Predicated region
        $region17: #{tpu_custom_call.1} parent=11 // pred_check
          %p140 = pneg %p94
        $region18: #{tpu_custom_call.1} parent=11 // pred_check_branch
          %142 = sbr.rel (%p140) target = $region20
        $region19: #{tpu_custom_call.1} parent=11 // pred_region
          _
        $region20: #{tpu_custom_call.1} parent=11 // pred_fallthru
          _
      $region12: #{tpu_custom_call.1} parent=5 // pred_fallthru
        _
      %p143 = scmp.lt.s32.totalorder %s12, 4
      // Predicated region
      $region21: #{tpu_custom_call.1} parent=5 // pred_check
        %p144 = pneg %p143
      $region22: #{tpu_custom_call.1} parent=5 // pred_check_branch
        %146 = sbr.rel (%p144) target = $region24
      $region23: #{tpu_custom_call.1} parent=5 // pred_region
        // Predicated region
        $region25: #{tpu_custom_call.1} parent=23 // pred_check
          %p147 = pneg %p46
        $region26: #{tpu_custom_call.1} parent=23 // pred_check_branch
          %149 = sbr.rel (%p147) target = $region28
        $region27: #{tpu_custom_call.1} parent=23 // pred_region
          %p150 = scmp.lt.s32.totalorder %s19, 1
          %s151 = scalar_select %p150, %s19, 1
          %p152 = scmp.lt.s32.totalorder %s20, 1
          %s153 = scalar_select %p152, %s20, 1
          %s154 = smul.addr %s151, 2
          %s155 = sadd.s32 %s153, %s154
          %s156 = smul.addr %s155, 4
          %s157 = scalar_lea.vmem %s0, %s156
        $region28: #{tpu_custom_call.1} parent=23 // pred_fallthru
          _
      $region24: #{tpu_custom_call.1} parent=5 // pred_fallthru
        _
      %p158 = scmp.le.s32.totalorder 1, %s12
      %p159 = scmp.lt.s32.totalorder %s12, 5
      %p160 = pnand %p158, %p159
      %p161 = pneg %p160
      // Predicated region
      $region29: #{tpu_custom_call.1} parent=5 // pred_check
        _
      $region30: #{tpu_custom_call.1} parent=5 // pred_check_branch
        %163 = sbr.rel (%p160) target = $region32
      $region31: #{tpu_custom_call.1} parent=5 // pred_region
        %s164 = ssub.s32 %s12, 1
        %p165 = scmp.lt.s32.totalorder %s21, 1
        %s166 = scalar_select %p165, %s21, 1
        %p167 = scmp.lt.s32.totalorder %s22, 1
        %s168 = scalar_select %p167, %s22, 1
        %s169 = smul.addr %s166, 2
        %s170 = sadd.s32 %s168, %s169
        %s171 = smul.addr %s170, 4
        %s172 = scalar_lea.vmem %s0, %s171
        %p173 = pneg %p52
        %p174 = pneg %p49
        %p175 = pneg %p73
        %p176 = pneg %p70
        %p177 = pneg %p94
        %p178 = pneg %p91
        %p179 = pneg %p122
        %p180 = pneg %p119
        %s181 = sand.u32 %s109, 1
        %s182 = scalar_lea.sflag [#allocation3], %s181
        %s183 = sand.u32 %s109, 1
        %s184 = smul.addr %s183, 24
        %s185 = scalar_lea.vmem [#allocation2], %s184
        %p186 = scmp.lt.s32.totalorder %s21, 1
        %s187 = scalar_select %p186, %s21, 1
        %p188 = scmp.lt.s32.totalorder %s22, 1
        %s189 = scalar_select %p188, %s22, 1
        %s190 = smul.addr %s187, 2
        %s191 = sadd.s32 %s189, %s190
        %s192 = smul.addr %s191, 4
        %s193 = scalar_lea.vmem %s0, %s192
        %v194 = vld [vmem:[%s1] sm:$0xff]
        %v195 = vld [vmem:[%s1 + $0x8] sm:$0xff]
        %v196 = vld [vmem:[%s1 + $0x10] sm:$0xff]
        %v197 = vld [vmem:[%s193] sm:$0xf]
        %v198 = vld [vmem:[%s2] sm:$0xff]
        %v199 = vld [vmem:[%s2 + $0x8] sm:$0xff]
        %v200 = vld [vmem:[%s2 + $0x10] sm:$0xff]
        %202 = vset.pattern.permute.xlu0 0
        %203 = vperm.xlu0 %202, %v198
        %v204 = vpop.permute.xlu0 %203
        %207 = vset.pattern.permute.xlu0 0
        %208 = vperm.xlu0 %207, %v199
        %v209 = vpop.permute.xlu0 %208
        %212 = vset.pattern.permute.xlu0 0
        %213 = vperm.xlu0 %212, %v200
        %v214 = vpop.permute.xlu0 %213
        %vm216 = vcmask 31744
        %v218 = vsel %vm216, %v194, 0
        %v221 = vsel %vm216, %v195, 0
        %v224 = vsel %vm216, %v196, 0
        %vm226 = vcmask 1043456
        %v228 = vsel %vm226, %v197, 0
        %230 = vmatprep.subr.mxu0 0.0
        %231 = vmatpush1.msra.mxu0 %v228
        %232 = vmatprep.subr.mxu0 0.0
        %233 = vmatpush1.msra.mxu0 0.0
        %234 = vmatprep.subr.mxu0 0.0
        %235 = vmatpush1.msra.mxu0 0.0
        %236 = vmatprep.subr.mxu0 0.0
        %237 = vmatpush1.msra.mxu0 0.0
        %238 = vmatprep.subr.mxu0 0.0
        %239 = vmatpush1.msra.mxu0 0.0
        %240 = vmatprep.subr.mxu0 0.0
        %241 = vmatpush1.msra.mxu0 0.0
        %242 = vmatprep.subr.mxu0 0.0
        %243 = vmatpush1.msra.mxu0 0.0
        %244 = vmatprep.subr.mxu0 0.0
        %245 = vmatpush1.msra.mxu0 0.0
        %246 = vmatprep.subr.mxu0 0.0
        %247 = vmatpush1.msra.mxu0 0.0
        %248 = vmatprep.subr.mxu0 0.0
        %249 = vmatpush1.msra.mxu0 0.0
        %250 = vmatprep.subr.mxu0 0.0
        %251 = vmatpush1.msra.mxu0 0.0
        %252 = vmatprep.subr.mxu0 0.0
        %253 = vmatpush1.msra.mxu0 0.0
        %254 = vmatprep.subr.mxu0 0.0
        %255 = vmatpush1.msra.mxu0 0.0
        %256 = vmatprep.subr.mxu0 0.0
        %257 = vmatpush1.msra.mxu0 0.0
        %258 = vmatprep.subr.mxu0 0.0
        %259 = vmatpush1.msra.mxu0 0.0
        %260 = vmatprep.subr.mxu0 0.0
        %261 = vmatpush1.msra.mxu0 0.0
        %262 = vmatprep.subr.mxu0 0.0
        %263 = vmatpush1.msra.mxu0 0.0
        %264 = vmatprep.subr.mxu0 0.0
        %265 = vmatpush1.msra.mxu0 0.0
        %266 = vmatprep.subr.mxu0 0.0
        %267 = vmatpush1.msra.mxu0 0.0
        %268 = vmatprep.subr.mxu0 0.0
        %269 = vmatpush1.msra.mxu0 0.0
        %270 = vmatprep.subr.mxu0 0.0
        %271 = vmatpush1.msra.mxu0 0.0
        %272 = vmatprep.subr.mxu0 0.0
        %273 = vmatpush1.msra.mxu0 0.0
        %274 = vmatprep.subr.mxu0 0.0
        %275 = vmatpush1.msra.mxu0 0.0
        %276 = vmatprep.subr.mxu0 0.0
        %277 = vmatpush1.msra.mxu0 0.0
        %278 = vmatprep.subr.mxu0 0.0
        %279 = vmatpush1.msra.mxu0 0.0
        %280 = vmatprep.subr.mxu0 0.0
        %281 = vmatpush1.msra.mxu0 0.0
        %282 = vmatprep.subr.mxu0 0.0
        %283 = vmatpush1.msra.mxu0 0.0
        %284 = vmatprep.subr.mxu0 0.0
        %285 = vmatpush1.msra.mxu0 0.0
        %286 = vmatprep.subr.mxu0 0.0
        %287 = vmatpush1.msra.mxu0 0.0
        %288 = vmatprep.subr.mxu0 0.0
        %289 = vmatpush1.msra.mxu0 0.0
        %290 = vmatprep.subr.mxu0 0.0
        %291 = vmatpush1.msra.mxu0 0.0
        %292 = vmatprep.subr.mxu0 0.0
        %293 = vmatpush1.msra.mxu0 0.0
        %294 = vmatprep.mubr.f32.mxu0 0.0
        %295 = vmatmul.mubr.f32.gmra.mrb[0].mxu0 %v218
        %v296 = vpop.f32.mrb[0].mxu0
        %v297 = vadd.f32 %v204, %v296
        %v298 = vpop.f32.mrb[0].mxu0
        %299 = vmatprep.mubr.f32.mxu0 0.0
        %300 = vmatmul.mubr.f32.gmra.mrb[0].mxu0 %v221
        %v301 = vpop.f32.mrb[0].mxu0
        %v302 = vadd.f32 %v209, %v301
        %v303 = vpop.f32.mrb[0].mxu0
        %304 = vmatprep.mubr.f32.mxu0 0.0
        %305 = vmatmul.mubr.f32.gmra.mrb[0].mxu0 %v224
        %v306 = vpop.f32.mrb[0].mxu0
        %v307 = vadd.f32 %v214, %v306
        %v308 = vpop.f32.mrb[0].mxu0
        %309 = vdwg.mxu0
        %v310 = vmax.f32 %v297, 0.0
        %v311 = vmax.f32 %v302, 0.0
        %v312 = vmax.f32 %v307, 0.0
        %313 = vst [vmem:[%s185] sm:$0xff] %v310
        %314 = vst [vmem:[%s185 + $0x8] sm:$0xff] %v311
        %315 = vst [vmem:[%s185 + $0x10] sm:$0xff] %v312
        %s316 = sand.u32 %s109, 1
        %s317 = scalar_lea.sflag [#allocation3], %s316
        %s318 = sand.u32 %s109, 1
        %s319 = smul.addr %s318, 24
        %s320 = scalar_lea.vmem [#allocation2], %s319
        // Predicated region
        $region33: #{tpu_custom_call.1} parent=31 // pred_check
          %p321 = pneg %p119
        $region34: #{tpu_custom_call.1} parent=31 // pred_check_branch
          %323 = sbr.rel (%p321) target = $region36
        $region35: #{tpu_custom_call.1} parent=31 // pred_region
          %s325 = ssub.s32 384, 384
          %326 = vsyncadd %s317, %s325
          %s327 = smul.addr %s21, 6
          %s328 = sadd.s32 %s22, %s327
          %s329 = smul.addr %s328, 128
          %s330 = scalar_lea.hbm %s3, %s329
          %s331 = sshll.u32 %s320, 4
          %s332 = int_to_ptr.vmem [resolvable:$true] %s331
          %337 = dma.vmem_to_hbm [thread:$0]  %s332, 384, %s330, %s317, 128, 256, 8
        $region36: #{tpu_custom_call.1} parent=31 // pred_fallthru
          _
      $region32: #{tpu_custom_call.1} parent=5 // pred_fallthru
        _
      %p338 = scmp.le.s32.totalorder 2, %s12
      // Predicated region
      $region37: #{tpu_custom_call.1} parent=5 // pred_check
        %p339 = pneg %p338
      $region38: #{tpu_custom_call.1} parent=5 // pred_check_branch
        %341 = sbr.rel (%p339) target = $region40
      $region39: #{tpu_custom_call.1} parent=5 // pred_region
        %s342 = ssub.s32 %s12, 2
        // Predicated region
        $region41: #{tpu_custom_call.1} parent=39 // pred_check
          %p343 = pneg %p125
        $region42: #{tpu_custom_call.1} parent=39 // pred_check_branch
          %345 = sbr.rel (%p343) target = $region44
        $region43: #{tpu_custom_call.1} parent=39 // pred_region
          %s346 = sand.u32 %s110, 1
          %s347 = scalar_lea.sflag [#allocation3], %s346
          %s348 = sand.u32 %s110, 1
          %s349 = smul.addr %s348, 24
          %s350 = scalar_lea.vmem [#allocation2], %s349
          %351 = dma.done %s347, 384
        $region44: #{tpu_custom_call.1} parent=39 // pred_fallthru
          _
      $region40: #{tpu_custom_call.1} parent=5 // pred_fallthru
        _
    $region6: #{tpu_custom_call.1} parent=1 // loop_footer
      %s16 = sadd.s32 1, %s12
    $region7: #{tpu_custom_call.1} parent=1 // loop_footer_branch
      %11 = sbr.rel target = $region3
    $region8: #{tpu_custom_call.1} parent=1 // loop_exit
      _
    %352 = vsyncpa [#allocation3], 1
    %s353 = scalar_lea.sflag [#allocation3], 1
    %354 = vsyncpa %s353, 1

</llo_original>
